<compile_context>
chip_gen: v7x
topology: tpu7x:2x2x1
jax: 0.10.0
libtpu: 0.0.40
codegen_flags: <defaults>
</compile_context>

<pallas_src>
import functools
import math

import jax
import jax.numpy as jnp
from jax.experimental import pallas as pl
from jax.experimental.pallas import tpu as pltpu


# ---------------------------------------------------------------------------
# Conv1D (addmm) kernel:  out = x @ w + b, tiled over rows (M).
# ---------------------------------------------------------------------------
def _linear_kernel(x_ref, w_ref, b_ref, o_ref):
    acc = jnp.dot(x_ref[...], w_ref[...], preferred_element_type=jnp.float32)
    o_ref[...] = (acc + b_ref[...]).astype(o_ref.dtype)


def linear(x2d, w, b, *, tile_m=256, out_dtype=None):
    """x2d: [M, Din]; w: [Din, Dout]; b: [Dout] (f32) -> [M, Dout]."""
    M, Din = x2d.shape
    Dout = w.shape[1]
    if out_dtype is None:
        out_dtype = x2d.dtype
    tm = min(tile_m, M)          # tile_m=256 keeps double-buffered tiles inside 32 MiB
    grid_m = pl.cdiv(M, tm)      # scoped VMEM even for Dout = 3*D on v7x.
    return pl.pallas_call(
        _linear_kernel,
        out_shape=jax.ShapeDtypeStruct((M, Dout), out_dtype),
        grid_spec=pltpu.PrefetchScalarGridSpec(
            num_scalar_prefetch=0,
            grid=(grid_m,),
            in_specs=[
                pl.BlockSpec((tm, Din), lambda i: (i, 0)),
                pl.BlockSpec((Din, Dout), lambda i: (0, 0)),   # weight resident across grid
                pl.BlockSpec((1, Dout), lambda i: (0, 0)),
            ],
            out_specs=pl.BlockSpec((tm, Dout), lambda i: (i, 0)),
        ),
        compiler_params=pltpu.CompilerParams(
            dimension_semantics=("parallel",),
            vmem_limit_bytes=32 * 1024 * 1024,
        ),
    )(x2d, w, b.reshape(1, Dout))


# ---------------------------------------------------------------------------
# Per-batch masked multi-head attention kernel.
#   qkv: [B, T, 3*D] (q | k | v concatenated along feature, straight from the projection)
#   lengths: [B] int32 (scalar-prefetched into SMEM)
#   out: [B, T, D]  (heads already merged -> lane-dense stores)
# ---------------------------------------------------------------------------
def _attn_kernel(lengths_ref, qkv_ref, o_ref, *, n_head, d_model, scale):
    T = qkv_ref.shape[1]
    dh = d_model // n_head
    b = pl.program_id(0)
    l = lengths_ref[b]
    inv_sqrt_dh = 1.0 / math.sqrt(dh)

    # column (key) validity mask, built once for all heads
    col = jax.lax.broadcasted_iota(jnp.int32, (1, T), 1)
    col_valid = col < l                                   # [1, T] bool

    head_outs = []
    for h in range(n_head):                               # heads folded into one grid step
        q = qkv_ref[0, :, h * dh:(h + 1) * dh]                        # [T, dh]
        k = qkv_ref[0, :, d_model + h * dh:d_model + (h + 1) * dh]    # [T, dh]
        v = qkv_ref[0, :, 2 * d_model + h * dh:2 * d_model + (h + 1) * dh]

        # scores = q @ k^T without materializing a transposed K (MXU handles NT for free)
        w = jax.lax.dot_general(
            q, k, (((1,), (1,)), ((), ())), preferred_element_type=jnp.float32
        )                                                  # [T, T] f32
        if scale:
            w = w * inv_sqrt_dh
        w = jnp.where(col_valid, w, -1.0e9)

        # softmax kept in f32 (also on bf16 compute path); recip goes to the EUP slot
        m = jnp.max(w, axis=-1, keepdims=True)
        e = jnp.exp(w - m)
        s = jnp.sum(e, axis=-1, keepdims=True)
        p = e * pl.reciprocal(s, approx=True)
        # attn_dropout: identity (eval mode)

        head_outs.append(
            jnp.dot(p.astype(v.dtype), v, preferred_element_type=jnp.float32)
        )                                                  # [T, dh] f32

    out = jnp.concatenate(head_outs, axis=-1)              # [T, D] lane-dense slab
    row = jax.lax.broadcasted_iota(jnp.int32, (T, 1), 0)
    out = jnp.where(row < l, out, 0.0)                     # zero padded query rows (== p*mask)
    o_ref[0] = out.astype(o_ref.dtype)


def masked_attention(qkv, lengths, *, n_head, scale, out_dtype):
    B, T, D3 = qkv.shape
    D = D3 // 3
    kernel = functools.partial(_attn_kernel, n_head=n_head, d_model=D, scale=scale)
    return pl.pallas_call(
        kernel,
        out_shape=jax.ShapeDtypeStruct((B, T, D), out_dtype),
        grid_spec=pltpu.PrefetchScalarGridSpec(
            num_scalar_prefetch=1,
            grid=(B,),
            in_specs=[pl.BlockSpec((1, T, D3), lambda b, lens: (b, 0, 0))],
            out_specs=pl.BlockSpec((1, T, D), lambda b, lens: (b, 0, 0)),
        ),
        compiler_params=pltpu.CompilerParams(
            dimension_semantics=("parallel",),
        ),
    )(lengths, qkv)


# ---------------------------------------------------------------------------
# Full forward pass (glue in plain JAX, hot paths in Pallas)
# ---------------------------------------------------------------------------
def seq_mha_forward(x, lengths, params, n_head, scale=False,
                    compute_dtype=jnp.float32, tile_m=256):
    B, T, D = x.shape
    cd = compute_dtype

    w_qkv = params["w_qkv"].astype(cd)
    w_proj = params["w_proj"].astype(cd)
    b_qkv = params["b_qkv"].astype(jnp.float32)    # bias added in f32 accumulator
    b_proj = params["b_proj"].astype(jnp.float32)

    # input_to_q_k_v: Conv1D(D -> 3D). Output stays concatenated; the head/q-k-v split is
    # done inside the attention kernel (no jnp.split / transposes -> no extra HBM passes).
    qkv = linear(x.reshape(B * T, D).astype(cd), w_qkv, b_qkv,
                 tile_m=tile_m, out_dtype=cd)
    qkv = qkv.reshape(B, T, 3 * D)                 # free reshape (leading dims only)

    # masked multi-head attention; emits merged heads as [B, T, D] directly.
    a = masked_attention(qkv, lengths, n_head=n_head, scale=scale, out_dtype=cd)

    # merge_head_proj: Conv1D(D -> D); final result stored in f32.
    out = linear(a.reshape(B * T, D), w_proj, b_proj,
                 tile_m=tile_m, out_dtype=jnp.float32)
    # output_dropout: identity (eval mode)
    return out.reshape(B, T, D)


# ---------------------------------------------------------------------------
# Pure-JAX reference (mirrors the PyTorch forward) for verification
# ---------------------------------------------------------------------------
def seq_mha_reference(x, lengths, params, n_head, scale=False):
    B, T, D = x.shape
    dh = D // n_head
    qkv = x.reshape(B * T, D) @ params["w_qkv"] + params["b_qkv"]
    qkv = qkv.reshape(B, T, 3 * D)
    q, k, v = jnp.split(qkv, 3, axis=2)
    q = q.reshape(B, T, n_head, dh).transpose(0, 2, 1, 3)
    k = k.reshape(B, T, n_head, dh).transpose(0, 2, 3, 1)
    v = v.reshape(B, T, n_head, dh).transpose(0, 2, 1, 3)
    w = jnp.einsum("bhqd,bhdk->bhqk", q, k)
    if scale:
        w = w / math.sqrt(dh)
    row = jnp.arange(T)[:, None]
    col = jnp.arange(T)[None, :]
    mask = ((row < lengths[:, None, None]) & (col < lengths[:, None, None])).astype(
        jnp.float32
    )[:, None, :, :]
    w = w * mask + (-1.0e9) * (1.0 - mask)
    w = jax.nn.softmax(w, axis=-1) * mask
    a = jnp.einsum("bhqk,bhkd->bhqd", w, v)
    a = a.transpose(0, 2, 1, 3).reshape(B, T, D)
    out = a.reshape(B * T, D) @ params["w_proj"] + params["b_proj"]
    return out.reshape(B, T, D)


# ---------------------------------------------------------------------------
# Deterministic parameter init (matches PyTorch shapes / init style)
# ---------------------------------------------------------------------------
def init_params(key, d_in):
    k1, k2, k3, k4 = jax.random.split(key, 4)

    def xavier(k, fan_in, fan_out):
        bound = math.sqrt(6.0 / (fan_in + fan_out))
        return jax.random.uniform(k, (fan_in, fan_out), jnp.float32, -bound, bound)

    return {
        "w_qkv": xavier(k1, d_in, 3 * d_in),
        "b_qkv": jax.random.uniform(k2, (3 * d_in,), jnp.float32, -0.01, 0.01),
        "w_proj": xavier(k3, d_in, d_in),
        "b_proj": jax.random.uniform(k4, (d_in,), jnp.float32, -0.01, 0.01),
    }


if __name__ == "__main__":
    B, T, D, H = 2, 8, 32, 4
    scale = True

    key = jax.random.PRNGKey(0)
    kx, kp = jax.random.split(key)
    x = jax.random.normal(kx, (B, T, D), jnp.float32)
    lengths = jnp.array([8, 5], dtype=jnp.int32)
    params = init_params(kp, D)

    ref = seq_mha_reference(x, lengths, params, n_head=H, scale=scale)

    # f32 compute path (tolerance covers the EUP approx-reciprocal in the softmax denom)
    out = seq_mha_forward(x, lengths, params, n_head=H, scale=scale)
    out = jax.block_until_ready(out)
    assert out.shape == (B, T, D)
    assert jnp.allclose(out, ref, atol=5e-3, rtol=5e-3), "f32 mismatch vs reference"

    # bf16 compute path (activations/weights bf16, f32 accumulation + f32 softmax)
    out_bf16 = seq_mha_forward(x, lengths, params, n_head=H, scale=scale,
                               compute_dtype=jnp.bfloat16)
    out_bf16 = jax.block_until_ready(out_bf16)
    assert jnp.allclose(out_bf16, ref, atol=5e-2, rtol=5e-2), "bf16 mismatch vs reference"

    print("KERNEL_OK")
</pallas_src>

<mosaic_0001>
module attributes {stable_mosaic.version = 11 : i64} {
  func.func @_linear_kernel(%arg0: i32, %arg1: memref<16x32xf32, #tpu.memory_space<vmem>>, %arg2: memref<32x96xf32, #tpu.memory_space<vmem>>, %arg3: memref<1x96xf32, #tpu.memory_space<vmem>>, %arg4: memref<16x96xf32, #tpu.memory_space<vmem>>) attributes {dimension_semantics = [#tpu.dimension_semantics<parallel>], iteration_bounds = array<i64: 1>, scalar_prefetch = 0 : i64, scratch_operands = 0 : i64, tpu.core_type = #tpu.core_type<tc>, window_params = [{transform_indices = @transform_0, window_bounds = array<i64: 16, 32>}, {pipeline_mode = #tpu.pipeline_mode<synchronous>, transform_indices = @transform_1, window_bounds = array<i64: 32, 96>}, {pipeline_mode = #tpu.pipeline_mode<synchronous>, transform_indices = @transform_2, window_bounds = array<i64: 1, 96>}, {transform_indices = @transform_3, window_bounds = array<i64: 16, 96>}]} {
    %c0 = arith.constant 0 : index
    %c0_0 = arith.constant 0 : index
    %0 = vector.load %arg1[%c0, %c0_0] : memref<16x32xf32, #tpu.memory_space<vmem>>, vector<16x32xf32>
    %c0_1 = arith.constant 0 : index
    %c0_2 = arith.constant 0 : index
    %1 = vector.load %arg2[%c0_1, %c0_2] : memref<32x96xf32, #tpu.memory_space<vmem>>, vector<32x96xf32>
    %cst = arith.constant dense<0.000000e+00> : vector<16x96xf32>
    %2 = tpu.matmul %0, %1, %cst {dimension_numbers = #tpu.dot_dimension_numbers<[1], [0], [0], [1], [0, 0, 1, 1], [], []>} : vector<16x32xf32>, vector<32x96xf32>, vector<16x96xf32> -> vector<16x96xf32>
    %c0_3 = arith.constant 0 : index
    %c0_4 = arith.constant 0 : index
    %3 = vector.load %arg3[%c0_3, %c0_4] : memref<1x96xf32, #tpu.memory_space<vmem>>, vector<1x96xf32>
    %4 = vector.broadcast %3 : vector<1x96xf32> to vector<16x96xf32>
    %5 = arith.addf %2, %4 : vector<16x96xf32>
    %c0_5 = arith.constant 0 : index
    %c0_6 = arith.constant 0 : index
    %6 = vector.load %arg4[%c0_5, %c0_6] : memref<16x96xf32, #tpu.memory_space<vmem>>, vector<16x96xf32>
    tpu.vector_store %arg4[%c0_5, %c0_6], %5 {strides = array<i32>} : memref<16x96xf32, #tpu.memory_space<vmem>>, vector<16x96xf32>,
    return
  }
  func.func @transform_0(%arg0: i32) -> (i32, i32) {
    %c0_i32 = arith.constant 0 : i32
    %c0_i32_0 = arith.constant 0 : i32
    return %arg0, %c0_i32 : i32, i32
  }
  func.func @transform_1(%arg0: i32) -> (i32, i32) {
    %c0_i32 = arith.constant 0 : i32
    %c0_i32_0 = arith.constant 0 : i32
    %c0_i32_1 = arith.constant 0 : i32
    return %c0_i32, %c0_i32_0 : i32, i32
  }
  func.func @transform_2(%arg0: i32) -> (i32, i32) {
    %c0_i32 = arith.constant 0 : i32
    %c0_i32_0 = arith.constant 0 : i32
    %c0_i32_1 = arith.constant 0 : i32
    return %c0_i32, %c0_i32_0 : i32, i32
  }
  func.func @transform_3(%arg0: i32) -> (i32, i32) {
    %c0_i32 = arith.constant 0 : i32
    %c0_i32_0 = arith.constant 0 : i32
    return %arg0, %c0_i32 : i32, i32
  }
}

</mosaic_0001>

<llo_original>
// kernel: tpu_custom_call.1
$region0: #{tpu_custom_call.1}
  #allocation0 [shape = 'u32[]', space=smem, size = 0x4, offset = 0x4, fixed_abs, tag = 'smem constant byte address 0x4 - core index']
  #allocation1 [shape = 'u32[144,128]{1,0:T(1,128)}', space=vmem, size = 0x12000, scoped, tag = 'internal scratch']
  %s0 = inlined_call_operand.hbm [shape: f32[16,32], index: 0, kind: input, shape index: {}]
  %s1 = inlined_call_operand.hbm [shape: f32[32,96], index: 1, kind: input, shape index: {}]
  %s2 = inlined_call_operand.vmem [shape: f32[1,96], index: 2, kind: input, shape index: {}]
  %s3 = inlined_call_operand.hbm [shape: f32[16,96], index: 3, kind: output, shape index: {}]
  %s4 = sld [smem:[#allocation0]]
  $region30: #{tpu_custom_call.1} parent=0
    _
  %s6 = ssub.s32 1, %s4
  %s7 = scalar_select 0, %s6, %s4
  $region1: #{tpu_custom_call.1} parent=0
    #allocation2 [shape = 'u8[8192]{0}', space=vmem, size = 0x2000, scoped, tag = 'input window, operand 0, single buffered']
    #allocation3 [shape = 's32[1]{0}', space=sflag, size = 0x4, scoped, tag = 'scoped memory for tpu_custom_call.1']
    #allocation4 [shape = 's32[1]{0}', space=sflag, size = 0x4, scoped, tag = 'scoped memory for tpu_custom_call.1']
    #allocation5 [shape = 'u8[16384]{0}', space=vmem, size = 0x4000, scoped, tag = 'input window, operand 1, single buffered']
    #allocation6 [shape = 's32[1]{0}', space=sflag, size = 0x4, scoped, tag = 'scoped memory for tpu_custom_call.1']
    #allocation7 [shape = 'u8[8192]{0}', space=vmem, size = 0x2000, scoped, tag = 'output window, operand 0, single buffered']
    %8 = vsyncpa [#allocation3], 0
    %9 = vsyncpa [#allocation6], 0
    %10 = vsyncpa [#allocation4], 0
    // Predicated region
    $region2: #{tpu_custom_call.1} parent=1 // pred_check
      _
    $region3: #{tpu_custom_call.1} parent=1 // pred_check_branch
      %12 = sbr.rel (0) target = $region5
    $region4: #{tpu_custom_call.1} parent=1 // pred_region
      %s14 = ssub.s32 256, 256
      %15 = vsyncadd [#allocation3], %s14
      %s16 = sshll.u32 [#allocation2], 4
      %s17 = int_to_ptr.vmem [resolvable:$true] %s16
      %22 = dma.hbm_to_vmem [thread:$0]  %s0, 256, %s17, [#allocation3], 128, 128, 8
    $region5: #{tpu_custom_call.1} parent=1 // pred_fallthru
      _
    // Predicated region
    $region6: #{tpu_custom_call.1} parent=1 // pred_check
      _
    $region7: #{tpu_custom_call.1} parent=1 // pred_check_branch
      %24 = sbr.rel (0) target = $region9
    $region8: #{tpu_custom_call.1} parent=1 // pred_region
      %s26 = ssub.s32 512, 512
      %27 = vsyncadd [#allocation6], %s26
      %s28 = sshll.u32 [#allocation5], 4
      %s29 = int_to_ptr.vmem [resolvable:$true] %s28
      %34 = dma.hbm_to_vmem [thread:$0]  %s1, 512, %s29, [#allocation6], 128, 128, 8
    $region9: #{tpu_custom_call.1} parent=1 // pred_fallthru
      _
    // Predicated region
    $region10: #{tpu_custom_call.1} parent=1 // pred_check
      _
    $region11: #{tpu_custom_call.1} parent=1 // pred_check_branch
      %36 = sbr.rel (0) target = $region13
    $region12: #{tpu_custom_call.1} parent=1 // pred_region
      _
    $region13: #{tpu_custom_call.1} parent=1 // pred_fallthru
      _
    // Predicated region
    $region14: #{tpu_custom_call.1} parent=1 // pred_check
      _
    $region15: #{tpu_custom_call.1} parent=1 // pred_check_branch
      %38 = sbr.rel (0) target = $region17
    $region16: #{tpu_custom_call.1} parent=1 // pred_region
      %39 = dma.done [#allocation3], 256
    $region17: #{tpu_custom_call.1} parent=1 // pred_fallthru
      _
    // Predicated region
    $region18: #{tpu_custom_call.1} parent=1 // pred_check
      _
    $region19: #{tpu_custom_call.1} parent=1 // pred_check_branch
      %41 = sbr.rel (0) target = $region21
    $region20: #{tpu_custom_call.1} parent=1 // pred_region
      %42 = dma.done [#allocation6], 512
    $region21: #{tpu_custom_call.1} parent=1 // pred_fallthru
      _
    %v43 = vld [vmem:[#allocation2] sm:$0xff]
    %v44 = vld [vmem:[#allocation2 + $0x8] sm:$0xff]
    %v45 = vld [vmem:[#allocation5] sm:$0xff]
    %v46 = vld [vmem:[#allocation5 + $0x8] sm:$0xff]
    %v47 = vld [vmem:[#allocation5 + $0x10] sm:$0xff]
    %v48 = vld [vmem:[#allocation5 + $0x18] sm:$0xff]
    %v49 = vld [vmem:[%s2] sm:$0x1]
    %v51 = vlaneseq
    %v52 = vshrl.u32 %v51, 7
    %v53 = vsub.s32 0, %v52
    %v54 = vrot.slane %v49, %v53
    %vm56 = vcmask 261120
    %v58 = vsel %vm56, %v43, 0
    %v61 = vsel %vm56, %v44, 0
    %63 = vmatprep.subr.mxu0 0.0
    %64 = vmatpush1.msra.mxu0 %v45
    %65 = vmatprep.subr.mxu0 0.0
    %66 = vmatpush1.msra.mxu0 %v46
    %67 = vmatprep.subr.mxu0 0.0
    %68 = vmatpush1.msra.mxu0 %v47
    %69 = vmatprep.subr.mxu0 0.0
    %70 = vmatpush1.msra.mxu0 %v48
    %71 = vmatprep.subr.mxu0 0.0
    %72 = vmatpush1.msra.mxu0 0.0
    %73 = vmatprep.subr.mxu0 0.0
    %74 = vmatpush1.msra.mxu0 0.0
    %75 = vmatprep.subr.mxu0 0.0
    %76 = vmatpush1.msra.mxu0 0.0
    %77 = vmatprep.subr.mxu0 0.0
    %78 = vmatpush1.msra.mxu0 0.0
    %79 = vmatprep.subr.mxu0 0.0
    %80 = vmatpush1.msra.mxu0 0.0
    %81 = vmatprep.subr.mxu0 0.0
    %82 = vmatpush1.msra.mxu0 0.0
    %83 = vmatprep.subr.mxu0 0.0
    %84 = vmatpush1.msra.mxu0 0.0
    %85 = vmatprep.subr.mxu0 0.0
    %86 = vmatpush1.msra.mxu0 0.0
    %87 = vmatprep.subr.mxu0 0.0
    %88 = vmatpush1.msra.mxu0 0.0
    %89 = vmatprep.subr.mxu0 0.0
    %90 = vmatpush1.msra.mxu0 0.0
    %91 = vmatprep.subr.mxu0 0.0
    %92 = vmatpush1.msra.mxu0 0.0
    %93 = vmatprep.subr.mxu0 0.0
    %94 = vmatpush1.msra.mxu0 0.0
    %95 = vmatprep.subr.mxu0 0.0
    %96 = vmatpush1.msra.mxu0 0.0
    %97 = vmatprep.subr.mxu0 0.0
    %98 = vmatpush1.msra.mxu0 0.0
    %99 = vmatprep.subr.mxu0 0.0
    %100 = vmatpush1.msra.mxu0 0.0
    %101 = vmatprep.subr.mxu0 0.0
    %102 = vmatpush1.msra.mxu0 0.0
    %103 = vmatprep.subr.mxu0 0.0
    %104 = vmatpush1.msra.mxu0 0.0
    %105 = vmatprep.subr.mxu0 0.0
    %106 = vmatpush1.msra.mxu0 0.0
    %107 = vmatprep.subr.mxu0 0.0
    %108 = vmatpush1.msra.mxu0 0.0
    %109 = vmatprep.subr.mxu0 0.0
    %110 = vmatpush1.msra.mxu0 0.0
    %111 = vmatprep.subr.mxu0 0.0
    %112 = vmatpush1.msra.mxu0 0.0
    %113 = vmatprep.subr.mxu0 0.0
    %114 = vmatpush1.msra.mxu0 0.0
    %115 = vmatprep.subr.mxu0 0.0
    %116 = vmatpush1.msra.mxu0 0.0
    %117 = vmatprep.subr.mxu0 0.0
    %118 = vmatpush1.msra.mxu0 0.0
    %119 = vmatprep.subr.mxu0 0.0
    %120 = vmatpush1.msra.mxu0 0.0
    %121 = vmatprep.subr.mxu0 0.0
    %122 = vmatpush1.msra.mxu0 0.0
    %123 = vmatprep.subr.mxu0 0.0
    %124 = vmatpush1.msra.mxu0 0.0
    %125 = vmatprep.subr.mxu0 0.0
    %126 = vmatpush1.msra.mxu0 0.0
    %127 = vmatprep.mubr.f32.mxu0 0.0
    %128 = vmatmul.mubr.f32.gmra.mrb[0].mxu0 %v58
    %v129 = vpop.f32.mrb[0].mxu0
    %v130 = vadd.f32 %v54, %v129
    %v131 = vpop.f32.mrb[0].mxu0
    %132 = vmatprep.mubr.f32.mxu0 0.0
    %133 = vmatmul.mubr.f32.gmra.mrb[0].mxu0 %v61
    %v134 = vpop.f32.mrb[0].mxu0
    %v135 = vadd.f32 %v54, %v134
    %v136 = vpop.f32.mrb[0].mxu0
    %137 = vdwg.mxu0
    %vm138 = vcmask 785408
    %139 = vst.msk [vmem:[#allocation7] sm:$0xff] %vm138, %v130
    %140 = vst.msk [vmem:[#allocation7 + $0x8] sm:$0xff] %vm138, %v135
    // Predicated region
    $region22: #{tpu_custom_call.1} parent=1 // pred_check
      _
    $region23: #{tpu_custom_call.1} parent=1 // pred_check_branch
      %142 = sbr.rel (0) target = $region25
    $region24: #{tpu_custom_call.1} parent=1 // pred_region
      %s144 = ssub.s32 256, 256
      %145 = vsyncadd [#allocation4], %s144
      %s146 = sshll.u32 [#allocation7], 4
      %s147 = int_to_ptr.vmem [resolvable:$true] %s146
      %152 = dma.vmem_to_hbm [thread:$0]  %s147, 256, %s3, [#allocation4], 128, 128, 8
    $region25: #{tpu_custom_call.1} parent=1 // pred_fallthru
      _
    // Predicated region
    $region26: #{tpu_custom_call.1} parent=1 // pred_check
      _
    $region27: #{tpu_custom_call.1} parent=1 // pred_check_branch
      %154 = sbr.rel (0) target = $region29
    $region28: #{tpu_custom_call.1} parent=1 // pred_region
      %155 = dma.done [#allocation4], 256
    $region29: #{tpu_custom_call.1} parent=1 // pred_fallthru
      _
    %156 = vsyncpa [#allocation3], 1
    %157 = vsyncpa [#allocation6], 1
    %158 = vsyncpa [#allocation4], 1

</llo_original>
